<compile_context>
chip_gen: v7x
topology: tpu7x:2x2x1
jax: 0.10.0
libtpu: 0.0.40
codegen_flags: <defaults>
</compile_context>

<pallas_src>
import functools

import jax
import jax.numpy as jnp
import numpy as np
from jax.experimental import pallas as pl
from jax.experimental.pallas import tpu as pltpu


def _transfer_loss_kernel(logits_ref, labels_ref, src_ref, tgt_ref, ws_ref, wt_ref,
                          out_ref, *, gamma, w0, w1, inv_sqrt_h):
    # ---------------- weighted cross-entropy (C == 2, scalar class weights) ----------------
    logits = logits_ref[...]                                   # (N, 2) f32
    labels = labels_ref[...]                                   # (N, 1) i32

    mx = jnp.max(logits, axis=1, keepdims=True)
    lse = mx + jnp.log(jnp.sum(jnp.exp(logits - mx), axis=1, keepdims=True))
    logp = logits - lse                                        # (N, 2)

    is1 = labels == 1                                          # (N, 1) bool
    picked = jnp.where(is1, logp[:, 1:2], logp[:, 0:1])        # logp[i, y_i]
    w_per = jnp.where(is1, w1, w0)                             # weight[y_i] (scalar consts)
    cls_loss = -jnp.sum(w_per * picked) / jnp.sum(w_per)

    # --------------------------------- subspace match loss ---------------------------------
    src = src_ref[...]                                         # (M, H)
    tgt = tgt_ref[...]                                         # (M, H)
    m = src.shape[0]

    # two small MXU dots (no fused-then-sliced push)
    src_t = jnp.dot(src, ws_ref[...], preferred_element_type=jnp.float32)   # (M, H)
    tgt_t = jnp.dot(tgt, wt_ref[...], preferred_element_type=jnp.float32)   # (M, H)

    # (M, M) scaled dot product; contract axis 1 of BOTH operands (no explicit .T),
    # scale by 1/sqrt(H) in-kernel (M*M multiplies).
    dot = jax.lax.dot_general(src_t, tgt_t,
                              dimension_numbers=(((1,), (1,)), ((), ())),
                              preferred_element_type=jnp.float32) * inv_sqrt_h

    # softmax over dim 0 (each column is a distribution over source spaces) — exact divide
    cmax = jnp.max(dot, axis=0, keepdims=True)
    e = jnp.exp(dot - cmax)
    alpha = e / jnp.sum(e, axis=0, keepdims=True)

    # symmetric distance matrix, built directly on min/max indices:
    #   D[a,b] = || src[min(a,b)] - tgt[max(a,b)] + 1e-6 ||_2
    # (matches torch.pairwise_distance + the module's j>=i fill/mirror exactly)
    eps = 1e-6
    row3 = jax.lax.broadcasted_iota(jnp.int32, (m, m, 1), 0)
    col3 = jax.lax.broadcasted_iota(jnp.int32, (m, m, 1), 1)
    upper = col3 >= row3                                        # (M, M, 1) : b >= a
    src_min = jnp.where(upper, src[:, None, :], src[None, :, :])    # (M, M, H) src[min(a,b)]
    tgt_max = jnp.where(upper, tgt[None, :, :], tgt[:, None, :])    # (M, M, H) tgt[max(a,b)]
    diff = src_min - tgt_max + eps
    d_sym = jnp.sqrt(jnp.sum(diff * diff, axis=-1))             # (M, M)

    match_loss = jnp.sum(alpha * d_sym)
    out_ref[0, 0] = cls_loss + gamma * match_loss


def transfer_loss(logits, labels, src_mat, tgt_mat, src_weight, tgt_weight,
                  cls_weight=(0.1, 0.8), gamma=0.001):
    n, c = logits.shape
    m, h = src_mat.shape
    assert c == 2 and len(cls_weight) == 2, "module hardcodes a 2-class CE weight"
    assert tgt_mat.shape == (m, h), "symmetric-fill assumes #src spaces == #tgt spaces"
    assert src_weight.shape == (h, h) and tgt_weight.shape == (h, h)

    kernel = functools.partial(
        _transfer_loss_kernel,
        gamma=float(gamma),
        w0=float(cls_weight[0]), w1=float(cls_weight[1]),
        inv_sqrt_h=float(1.0 / np.sqrt(float(h))))

    vmem = pl.BlockSpec(memory_space=pltpu.MemorySpace.VMEM)
    out = pl.pallas_call(
        kernel,
        out_shape=jax.ShapeDtypeStruct((1, 1), jnp.float32),
        in_specs=[vmem] * 6,
        out_specs=pl.BlockSpec(memory_space=pltpu.MemorySpace.SMEM),
    )(logits.astype(jnp.float32),
      labels.reshape(-1, 1).astype(jnp.int32),
      src_mat.astype(jnp.float32),
      tgt_mat.astype(jnp.float32),
      src_weight.astype(jnp.float32),
      tgt_weight.astype(jnp.float32))
    return out[0, 0]


def _reference(logits, labels, cls_weight, src_mat, tgt_mat,
               src_weight, tgt_weight, gamma=0.001):
    # pure-JAX reference mirroring the PyTorch module
    logits = logits.astype(jnp.float32)
    logp = jax.nn.log_softmax(logits, axis=1)
    w = jnp.asarray(cls_weight, dtype=jnp.float32)
    w_per = w[labels]
    nll = -logp[jnp.arange(logits.shape[0]), labels]
    cls_loss = jnp.sum(w_per * nll) / jnp.sum(w_per)

    h = src_mat.shape[1]
    src_t = jnp.dot(src_mat, src_weight, preferred_element_type=jnp.float32)
    tgt_t = jnp.dot(tgt_mat, tgt_weight, preferred_element_type=jnp.float32)
    dot = (src_t @ tgt_t.T) / np.sqrt(h)
    alpha = jax.nn.softmax(dot, axis=0)
    eps = 1e-6
    diff = src_mat[:, None, :] - tgt_mat[None, :, :] + eps
    d_raw = jnp.sqrt(jnp.sum(diff * diff, axis=-1))
    m = d_raw.shape[0]
    row = jnp.arange(m)[:, None]
    col = jnp.arange(m)[None, :]
    d_sym = jnp.where(col >= row, d_raw, d_raw.T)
    match_loss = jnp.sum(alpha * d_sym)
    return cls_loss + gamma * match_loss


if __name__ == "__main__":
    key = jax.random.PRNGKey(0)
    k1, k2, k3, k4, k5, k6 = jax.random.split(key, 6)

    N, C = 8, 2       # samples, classes (CE weight has 2 entries in the module)
    M = 4             # number of src month spaces == number of tgt month spaces
    H = 32            # rep_hidden_states

    logits = jax.random.normal(k1, (N, C), dtype=jnp.float32)
    labels = jax.random.randint(k2, (N,), 0, C, dtype=jnp.int32)
    cls_weight = (0.1, 0.8)

    src_mat = jax.random.normal(k3, (M, H), dtype=jnp.float32)   # src_month_centroid_matrix
    tgt_mat = jax.random.normal(k4, (M, H), dtype=jnp.float32)   # tgt_month_centroid_matrix
    src_weight = jax.random.normal(k5, (H, H), dtype=jnp.float32) * 0.1  # model.src_weight
    tgt_weight = jax.random.normal(k6, (H, H), dtype=jnp.float32) * 0.1  # model.tgt_weight

    out = transfer_loss(logits, labels, src_mat, tgt_mat,
                        src_weight, tgt_weight, cls_weight=cls_weight, gamma=0.001)
    out = jax.block_until_ready(out)

    ref = _reference(logits, labels, cls_weight, src_mat, tgt_mat,
                     src_weight, tgt_weight, gamma=0.001)
    np.testing.assert_allclose(np.asarray(out), np.asarray(ref),
                               rtol=2e-4, atol=2e-5)

    print("KERNEL_OK")
</pallas_src>

<mosaic_0001>
module attributes {stable_mosaic.version = 11 : i64} {
  func.func @_transfer_loss_kernel(%arg0: memref<8x2xf32, #tpu.memory_space<vmem>>, %arg1: memref<8x1xi32, #tpu.memory_space<vmem>>, %arg2: memref<4x32xf32, #tpu.memory_space<vmem>>, %arg3: memref<4x32xf32, #tpu.memory_space<vmem>>, %arg4: memref<32x32xf32, #tpu.memory_space<vmem>>, %arg5: memref<32x32xf32, #tpu.memory_space<vmem>>, %arg6: memref<1x1xf32, #tpu.memory_space<smem>>) attributes {dimension_semantics = [], scalar_prefetch = 0 : i64, scratch_operands = 0 : i64, tpu.core_type = #tpu.core_type<tc>} {
    %c0 = arith.constant 0 : index
    %c0_0 = arith.constant 0 : index
    %0 = vector.load %arg0[%c0, %c0_0] : memref<8x2xf32, #tpu.memory_space<vmem>>, vector<8x2xf32>
    %c0_1 = arith.constant 0 : index
    %c0_2 = arith.constant 0 : index
    %1 = vector.load %arg1[%c0_1, %c0_2] : memref<8x1xi32, #tpu.memory_space<vmem>>, vector<8x1xi32>
    %cst = arith.constant dense<0xFF800000> : vector<8xf32>
    %2 = vector.multi_reduction <maximumf>, %0, %cst [1] : vector<8x2xf32> to vector<8xf32>
    %3 = vector.shape_cast %2 : vector<8xf32> to vector<8x1xf32>
    %4 = vector.broadcast %3 : vector<8x1xf32> to vector<8x2xf32>
    %5 = arith.subf %0, %4 : vector<8x2xf32>
    %6 = math.exp %5 : vector<8x2xf32>
    %cst_3 = arith.constant dense<0.000000e+00> : vector<8xf32>
    %7 = vector.multi_reduction <add>, %6, %cst_3 [1] : vector<8x2xf32> to vector<8xf32>
    %8 = vector.shape_cast %7 : vector<8xf32> to vector<8x1xf32>
    %9 = math.log %8 : vector<8x1xf32>
    %10 = arith.addf %3, %9 : vector<8x1xf32>
    %11 = vector.broadcast %10 : vector<8x1xf32> to vector<8x2xf32>
    %12 = arith.subf %0, %11 : vector<8x2xf32>
    %c1_i32 = arith.constant 1 : i32
    %13 = vector.broadcast %c1_i32 : i32 to vector<8x1xi32>
    %14 = arith.cmpi eq, %1, %13 : vector<8x1xi32>
    %15 = vector.extract_strided_slice %12 {offsets = [0, 1], sizes = [8, 1], strides = [1, 1]} : vector<8x2xf32> to vector<8x1xf32>
    %16 = vector.extract_strided_slice %12 {offsets = [0, 0], sizes = [8, 1], strides = [1, 1]} : vector<8x2xf32> to vector<8x1xf32>
    %17 = arith.select %14, %15, %16 : vector<8x1xi1>, vector<8x1xf32>
    %cst_4 = arith.constant 8.000000e-01 : f32
    %cst_5 = arith.constant 1.000000e-01 : f32
    %18 = vector.broadcast %cst_4 : f32 to vector<8x1xf32>
    %19 = vector.broadcast %cst_5 : f32 to vector<8x1xf32>
    %20 = arith.select %14, %18, %19 : vector<8x1xi1>, vector<8x1xf32>
    %21 = arith.mulf %20, %17 : vector<8x1xf32>
    %22 = vector.shape_cast %21 : vector<8x1xf32> to vector<1x8x1xf32>
    %cst_6 = arith.constant dense<0.000000e+00> : vector<1xf32>
    %23 = vector.multi_reduction <add>, %22, %cst_6 [1, 2] : vector<1x8x1xf32> to vector<1xf32>
    %24 = vector.shape_cast %23 : vector<1xf32> to vector<1x1x1xf32>
    %25 = vector.extract %24[0, 0, 0] : f32 from vector<1x1x1xf32>
    %cst_7 = arith.constant 0.000000e+00 : f32
    %26 = arith.subf %cst_7, %25 : f32
    %27 = vector.shape_cast %20 : vector<8x1xf32> to vector<1x8x1xf32>
    %cst_8 = arith.constant dense<0.000000e+00> : vector<1xf32>
    %28 = vector.multi_reduction <add>, %27, %cst_8 [1, 2] : vector<1x8x1xf32> to vector<1xf32>
    %29 = vector.shape_cast %28 : vector<1xf32> to vector<1x1x1xf32>
    %30 = vector.extract %29[0, 0, 0] : f32 from vector<1x1x1xf32>
    %31 = arith.divf %26, %30 : f32
    %c0_9 = arith.constant 0 : index
    %c0_10 = arith.constant 0 : index
    %32 = vector.load %arg2[%c0_9, %c0_10] : memref<4x32xf32, #tpu.memory_space<vmem>>, vector<4x32xf32>
    %c0_11 = arith.constant 0 : index
    %c0_12 = arith.constant 0 : index
    %33 = vector.load %arg3[%c0_11, %c0_12] : memref<4x32xf32, #tpu.memory_space<vmem>>, vector<4x32xf32>
    %c0_13 = arith.constant 0 : index
    %c0_14 = arith.constant 0 : index
    %34 = vector.load %arg4[%c0_13, %c0_14] : memref<32x32xf32, #tpu.memory_space<vmem>>, vector<32x32xf32>
    %cst_15 = arith.constant dense<0.000000e+00> : vector<4x32xf32>
    %35 = tpu.matmul %32, %34, %cst_15 {dimension_numbers = #tpu.dot_dimension_numbers<[1], [0], [0], [1], [0, 0, 1, 1], [], []>} : vector<4x32xf32>, vector<32x32xf32>, vector<4x32xf32> -> vector<4x32xf32>
    %c0_16 = arith.constant 0 : index
    %c0_17 = arith.constant 0 : index
    %36 = vector.load %arg5[%c0_16, %c0_17] : memref<32x32xf32, #tpu.memory_space<vmem>>, vector<32x32xf32>
    %cst_18 = arith.constant dense<0.000000e+00> : vector<4x32xf32>
    %37 = tpu.matmul %33, %36, %cst_18 {dimension_numbers = #tpu.dot_dimension_numbers<[1], [0], [0], [1], [0, 0, 1, 1], [], []>} : vector<4x32xf32>, vector<32x32xf32>, vector<4x32xf32> -> vector<4x32xf32>
    %cst_19 = arith.constant dense<0.000000e+00> : vector<4x4xf32>
    %38 = tpu.matmul %35, %37, %cst_19 {dimension_numbers = #tpu.dot_dimension_numbers<[1], [1], [0], [0], [0, 0, 1, 0], [], []>} : vector<4x32xf32>, vector<4x32xf32>, vector<4x4xf32> -> vector<4x4xf32>
    %cst_20 = arith.constant 0.176776692 : f32
    %39 = vector.broadcast %cst_20 : f32 to vector<4x4xf32>
    %40 = arith.mulf %38, %39 : vector<4x4xf32>
    %cst_21 = arith.constant dense<0xFF800000> : vector<4xf32>
    %41 = vector.multi_reduction <maximumf>, %40, %cst_21 [0] : vector<4x4xf32> to vector<4xf32>
    %42 = vector.shape_cast %41 : vector<4xf32> to vector<1x4xf32>
    %43 = vector.broadcast %42 : vector<1x4xf32> to vector<4x4xf32>
    %44 = arith.subf %40, %43 : vector<4x4xf32>
    %45 = math.exp %44 : vector<4x4xf32>
    %cst_22 = arith.constant dense<0.000000e+00> : vector<4xf32>
    %46 = vector.multi_reduction <add>, %45, %cst_22 [0] : vector<4x4xf32> to vector<4xf32>
    %47 = vector.shape_cast %46 : vector<4xf32> to vector<1x4xf32>
    %48 = vector.broadcast %47 : vector<1x4xf32> to vector<4x4xf32>
    %49 = arith.divf %45, %48 : vector<4x4xf32>
    %50 = tpu.iota {dimensions = array<i32: 0>} : vector<4x4x1xi32>
    %51 = tpu.iota {dimensions = array<i32: 1>} : vector<4x4x1xi32>
    %52 = arith.cmpi sge, %51, %50 : vector<4x4x1xi32>
    %53 = vector.shape_cast %32 : vector<4x32xf32> to vector<4x1x32xf32>
    %54 = vector.shape_cast %32 : vector<4x32xf32> to vector<1x4x32xf32>
    %55 = vector.shape_cast %52 : vector<4x4x1xi1> to vector<4x4x1xi1>
    %56 = vector.broadcast %55 : vector<4x4x1xi1> to vector<4x4x32xi1>
    %57 = vector.shape_cast %53 : vector<4x1x32xf32> to vector<4x1x32xf32>
    %58 = vector.broadcast %57 : vector<4x1x32xf32> to vector<4x4x32xf32>
    %59 = vector.shape_cast %54 : vector<1x4x32xf32> to vector<1x4x32xf32>
    %60 = vector.broadcast %59 : vector<1x4x32xf32> to vector<4x4x32xf32>
    %61 = arith.select %56, %58, %60 : vector<4x4x32xi1>, vector<4x4x32xf32>
    %62 = vector.shape_cast %33 : vector<4x32xf32> to vector<1x4x32xf32>
    %63 = vector.shape_cast %33 : vector<4x32xf32> to vector<4x1x32xf32>
    %64 = vector.shape_cast %52 : vector<4x4x1xi1> to vector<4x4x1xi1>
    %65 = vector.broadcast %64 : vector<4x4x1xi1> to vector<4x4x32xi1>
    %66 = vector.shape_cast %62 : vector<1x4x32xf32> to vector<1x4x32xf32>
    %67 = vector.broadcast %66 : vector<1x4x32xf32> to vector<4x4x32xf32>
    %68 = vector.shape_cast %63 : vector<4x1x32xf32> to vector<4x1x32xf32>
    %69 = vector.broadcast %68 : vector<4x1x32xf32> to vector<4x4x32xf32>
    %70 = arith.select %65, %67, %69 : vector<4x4x32xi1>, vector<4x4x32xf32>
    %71 = arith.subf %61, %70 : vector<4x4x32xf32>
    %cst_23 = arith.constant 9.99999997E-7 : f32
    %72 = vector.broadcast %cst_23 : f32 to vector<4x4x32xf32>
    %73 = arith.addf %71, %72 : vector<4x4x32xf32>
    %74 = arith.mulf %73, %73 : vector<4x4x32xf32>
    %cst_24 = arith.constant dense<0.000000e+00> : vector<4x4xf32>
    %75 = vector.multi_reduction <add>, %74, %cst_24 [2] : vector<4x4x32xf32> to vector<4x4xf32>
    %76 = math.sqrt %75 : vector<4x4xf32>
    %77 = arith.mulf %49, %76 : vector<4x4xf32>
    %78 = vector.shape_cast %77 : vector<4x4xf32> to vector<1x4x4xf32>
    %cst_25 = arith.constant dense<0.000000e+00> : vector<1xf32>
    %79 = vector.multi_reduction <add>, %78, %cst_25 [1, 2] : vector<1x4x4xf32> to vector<1xf32>
    %80 = vector.shape_cast %79 : vector<1xf32> to vector<1x1x1xf32>
    %81 = vector.extract %80[0, 0, 0] : f32 from vector<1x1x1xf32>
    %cst_26 = arith.constant 1.000000e-03 : f32
    %82 = arith.mulf %cst_26, %81 : f32
    %83 = arith.addf %31, %82 : f32
    %c0_27 = arith.constant 0 : index
    %c0_28 = arith.constant 0 : index
    %84 = memref.load %arg6[%c0_27, %c0_28] : memref<1x1xf32, #tpu.memory_space<smem>>
    memref.store %83, %arg6[%c0_27, %c0_28] : memref<1x1xf32, #tpu.memory_space<smem>>
    return
  }
}

</mosaic_0001>

<llo_original>
// kernel: tpu_custom_call.1
$region0: #{tpu_custom_call.1}
  #allocation0 [shape = 'u32[]', space=smem, size = 0x4, offset = 0x4, fixed_abs, tag = 'smem constant byte address 0x4 - core index']
  #allocation1 [shape = 'u32[144,128]{1,0:T(1,128)}', space=vmem, size = 0x12000, scoped, tag = 'internal scratch']
  %s0 = inlined_call_operand.vmem [shape: f32[8,2], index: 0, kind: input, shape index: {}]
  %s1 = inlined_call_operand.vmem [shape: s32[8,1], index: 1, kind: input, shape index: {}]
  %s2 = inlined_call_operand.hbm [shape: f32[4,32], index: 2, kind: input, shape index: {}]
  %s3 = inlined_call_operand.hbm [shape: f32[4,32], index: 3, kind: input, shape index: {}]
  %s4 = inlined_call_operand.vmem [shape: f32[32,32], index: 4, kind: input, shape index: {}]
  %s5 = inlined_call_operand.hbm [shape: f32[32,32], index: 5, kind: input, shape index: {}]
  %s6 = inlined_call_operand.hbm [shape: f32[1,1], index: 6, kind: output, shape index: {}]
  %s7 = sld [smem:[#allocation0]]
  $region46: #{tpu_custom_call.1} parent=0
    _
  %s9 = ssub.s32 1, %s7
  %s10 = scalar_select 0, %s9, %s7
  $region1: #{tpu_custom_call.1} parent=0
    #allocation2 [shape = 'u8[2048]{0}', space=vmem, size = 0x800, scoped, tag = 'input window, operand 2, single buffered']
    #allocation3 [shape = 's32[1]{0}', space=sflag, size = 0x4, scoped, tag = 'scoped memory for tpu_custom_call.1']
    #allocation4 [shape = 's32[1]{0}', space=sflag, size = 0x4, scoped, tag = 'scoped memory for tpu_custom_call.1']
    #allocation5 [shape = 'u8[2048]{0}', space=vmem, size = 0x800, scoped, tag = 'input window, operand 3, single buffered']
    #allocation6 [shape = 's32[1]{0}', space=sflag, size = 0x4, scoped, tag = 'scoped memory for tpu_custom_call.1']
    #allocation7 [shape = 'u8[16384]{0}', space=vmem, size = 0x4000, scoped, tag = 'input window, operand 5, single buffered']
    #allocation8 [shape = 'u8[512]{0}', space=smem, size = 0x200, scoped, tag = 'output window, operand 0, single buffered']
    %11 = vsyncpa [#allocation3], 0
    %12 = vsyncpa [#allocation6], 0
    %13 = vsyncpa [#allocation4], 0
    // Predicated region
    $region2: #{tpu_custom_call.1} parent=1 // pred_check
      _
    $region3: #{tpu_custom_call.1} parent=1 // pred_check_branch
      %15 = sbr.rel (0) target = $region5
    $region4: #{tpu_custom_call.1} parent=1 // pred_region
      _
    $region5: #{tpu_custom_call.1} parent=1 // pred_fallthru
      _
    // Predicated region
    $region6: #{tpu_custom_call.1} parent=1 // pred_check
      _
    $region7: #{tpu_custom_call.1} parent=1 // pred_check_branch
      %17 = sbr.rel (0) target = $region9
    $region8: #{tpu_custom_call.1} parent=1 // pred_region
      _
    $region9: #{tpu_custom_call.1} parent=1 // pred_fallthru
      _
    // Predicated region
    $region10: #{tpu_custom_call.1} parent=1 // pred_check
      _
    $region11: #{tpu_custom_call.1} parent=1 // pred_check_branch
      %19 = sbr.rel (0) target = $region13
    $region12: #{tpu_custom_call.1} parent=1 // pred_region
      %s21 = ssub.s32 64, 64
      %22 = vsyncadd [#allocation3], %s21
      %s24 = sshll.u32 [#allocation2], 4
      %s25 = int_to_ptr.vmem [resolvable:$true] %s24
      %27 = dma.hbm_to_vmem [thread:$0]  %s2, 64, %s25, [#allocation3]
    $region13: #{tpu_custom_call.1} parent=1 // pred_fallthru
      _
    // Predicated region
    $region14: #{tpu_custom_call.1} parent=1 // pred_check
      _
    $region15: #{tpu_custom_call.1} parent=1 // pred_check_branch
      %29 = sbr.rel (0) target = $region17
    $region16: #{tpu_custom_call.1} parent=1 // pred_region
      %s31 = ssub.s32 64, 64
      %32 = vsyncadd [#allocation6], %s31
      %s34 = sshll.u32 [#allocation5], 4
      %s35 = int_to_ptr.vmem [resolvable:$true] %s34
      %37 = dma.hbm_to_vmem [thread:$0]  %s3, 64, %s35, [#allocation6]
    $region17: #{tpu_custom_call.1} parent=1 // pred_fallthru
      _
    // Predicated region
    $region18: #{tpu_custom_call.1} parent=1 // pred_check
      _
    $region19: #{tpu_custom_call.1} parent=1 // pred_check_branch
      %39 = sbr.rel (0) target = $region21
    $region20: #{tpu_custom_call.1} parent=1 // pred_region
      _
    $region21: #{tpu_custom_call.1} parent=1 // pred_fallthru
      _
    // Predicated region
    $region22: #{tpu_custom_call.1} parent=1 // pred_check
      _
    $region23: #{tpu_custom_call.1} parent=1 // pred_check_branch
      %41 = sbr.rel (0) target = $region25
    $region24: #{tpu_custom_call.1} parent=1 // pred_region
      %s43 = ssub.s32 512, 512
      %44 = vsyncadd [#allocation6], %s43
      %s45 = sshll.u32 [#allocation7], 4
      %s46 = int_to_ptr.vmem [resolvable:$true] %s45
      %51 = dma.hbm_to_vmem [thread:$0]  %s5, 512, %s46, [#allocation6], 128, 128, 8
    $region25: #{tpu_custom_call.1} parent=1 // pred_fallthru
      _
    // Predicated region
    $region26: #{tpu_custom_call.1} parent=1 // pred_check
      _
    $region27: #{tpu_custom_call.1} parent=1 // pred_check_branch
      %53 = sbr.rel (0) target = $region29
    $region28: #{tpu_custom_call.1} parent=1 // pred_region
      %54 = dma.done [#allocation3], 64
    $region29: #{tpu_custom_call.1} parent=1 // pred_fallthru
      _
    // Predicated region
    $region30: #{tpu_custom_call.1} parent=1 // pred_check
      _
    $region31: #{tpu_custom_call.1} parent=1 // pred_check_branch
      %56 = sbr.rel (0) target = $region33
    $region32: #{tpu_custom_call.1} parent=1 // pred_region
      %57 = dma.done [#allocation6], 64
    $region33: #{tpu_custom_call.1} parent=1 // pred_fallthru
      _
    // Predicated region
    $region34: #{tpu_custom_call.1} parent=1 // pred_check
      _
    $region35: #{tpu_custom_call.1} parent=1 // pred_check_branch
      %59 = sbr.rel (0) target = $region37
    $region36: #{tpu_custom_call.1} parent=1 // pred_region
      %60 = dma.done [#allocation6], 512
    $region37: #{tpu_custom_call.1} parent=1 // pred_fallthru
      _
    %v61 = vld [vmem:[%s0] sm:$0xff]
    %v62 = vld [vmem:[%s1] sm:$0xff]
    %vm63 = vcmask 15360
    %v64 = vsel %vm63, %v61, -inf
    %65 = vmax.xlane.f32.xlu0 %v64
    %v66 = vpop.xlane.xlu0 %65
    %v67 = vsub.f32 %v61, %v66
    %v68 = vmul.f32 %v67, 1.442695
    %v69 = vpow.pop %v68
    %v70 = vsel %vm63, %v69, 0.0
    %71 = vadd.xlane.f32.xlu0 %v70
    %v72 = vpop.xlane.xlu0 %71
    %v73 = vlog2.pop %v72
    %v74 = vmul.f32 %v73, 0.6931472
    %v75 = vadd.f32 %v66, %v74
    %v76 = vsub.f32 %v61, %v75
    %vm77 = vcmp.eq.s32.totalorder %v62, 1
    %79 = vrot.lane.b32.xlu0 %v76, 127
    %v80 = vpop.permute.xlu0 %79
    %v82 = vsel %vm77, %v80, %v76
    %v83 = vsel %vm77, 0.8, 0.1
    %v84 = vmul.f32 %v83, %v82
    %vm85 = vcmask 7168
    %v86 = vsel %vm85, %v84, 0.0
    %87 = vadd.xlane.f32.xlu0 %v86
    %v88 = vpop.xlane.xlu0 %87
    %v89 = vrot.slane %v88, 4
    %v90 = vadd.f32 %v88, %v89
    %v91 = vrot.slane %v90, 2
    %v92 = vadd.f32 %v90, %v91
    %v93 = vrot.slane %v92, 1
    %v94 = vadd.f32 %v92, %v93
    %s95 = vtos %v94
    %s96 = ssub.f32 0.0, %s95
    %v97 = vsel %vm85, %v83, 0.0
    %98 = vadd.xlane.f32.xlu0 %v97
    %v99 = vpop.xlane.xlu0 %98
    %v100 = vrot.slane %v99, 4
    %v101 = vadd.f32 %v99, %v100
    %v102 = vrot.slane %v101, 2
    %v103 = vadd.f32 %v101, %v102
    %v104 = vrot.slane %v103, 1
    %v105 = vadd.f32 %v103, %v104
    %s106 = vtos %v105
    %v107 = vstv %s106
    %v108 = vrcp.pop %v107
    %s109 = vtos %v108
    %s110 = smul.f32 %s96, %s109
    %v111 = vld [vmem:[#allocation2] sm:$0xf]
    %v112 = vld [vmem:[#allocation5] sm:$0xf]
    %v113 = vld [vmem:[%s4] sm:$0xff]
    %v114 = vld [vmem:[%s4 + $0x8] sm:$0xff]
    %v115 = vld [vmem:[%s4 + $0x10] sm:$0xff]
    %v116 = vld [vmem:[%s4 + $0x18] sm:$0xff]
    %vm117 = vcmask 261120
    %v119 = vsel %vm117, %v111, 0
    %121 = vmatprep.subr.mxu0 0.0
    %122 = vmatpush1.msra.mxu0 %v113
    %123 = vmatprep.subr.mxu0 0.0
    %124 = vmatpush1.msra.mxu0 %v114
    %125 = vmatprep.subr.mxu0 0.0
    %126 = vmatpush1.msra.mxu0 %v115
    %127 = vmatprep.subr.mxu0 0.0
    %128 = vmatpush1.msra.mxu0 %v116
    %129 = vmatprep.subr.mxu0 0.0
    %130 = vmatpush1.msra.mxu0 0.0
    %131 = vmatprep.subr.mxu0 0.0
    %132 = vmatpush1.msra.mxu0 0.0
    %133 = vmatprep.subr.mxu0 0.0
    %134 = vmatpush1.msra.mxu0 0.0
    %135 = vmatprep.subr.mxu0 0.0
    %136 = vmatpush1.msra.mxu0 0.0
    %137 = vmatprep.subr.mxu0 0.0
    %138 = vmatpush1.msra.mxu0 0.0
    %139 = vmatprep.subr.mxu0 0.0
    %140 = vmatpush1.msra.mxu0 0.0
    %141 = vmatprep.subr.mxu0 0.0
    %142 = vmatpush1.msra.mxu0 0.0
    %143 = vmatprep.subr.mxu0 0.0
    %144 = vmatpush1.msra.mxu0 0.0
    %145 = vmatprep.subr.mxu0 0.0
    %146 = vmatpush1.msra.mxu0 0.0
    %147 = vmatprep.subr.mxu0 0.0
    %148 = vmatpush1.msra.mxu0 0.0
    %149 = vmatprep.subr.mxu0 0.0
    %150 = vmatpush1.msra.mxu0 0.0
    %151 = vmatprep.subr.mxu0 0.0
    %152 = vmatpush1.msra.mxu0 0.0
    %153 = vmatprep.subr.mxu0 0.0
    %154 = vmatpush1.msra.mxu0 0.0
    %155 = vmatprep.subr.mxu0 0.0
    %156 = vmatpush1.msra.mxu0 0.0
    %157 = vmatprep.subr.mxu0 0.0
    %158 = vmatpush1.msra.mxu0 0.0
    %159 = vmatprep.subr.mxu0 0.0
    %160 = vmatpush1.msra.mxu0 0.0
    %161 = vmatprep.subr.mxu0 0.0
    %162 = vmatpush1.msra.mxu0 0.0
    %163 = vmatprep.subr.mxu0 0.0
    %164 = vmatpush1.msra.mxu0 0.0
    %165 = vmatprep.subr.mxu0 0.0
    %166 = vmatpush1.msra.mxu0 0.0
    %167 = vmatprep.subr.mxu0 0.0
    %168 = vmatpush1.msra.mxu0 0.0
    %169 = vmatprep.subr.mxu0 0.0
    %170 = vmatpush1.msra.mxu0 0.0
    %171 = vmatprep.subr.mxu0 0.0
    %172 = vmatpush1.msra.mxu0 0.0
    %173 = vmatprep.subr.mxu0 0.0
    %174 = vmatpush1.msra.mxu0 0.0
    %175 = vmatprep.subr.mxu0 0.0
    %176 = vmatpush1.msra.mxu0 0.0
    %177 = vmatprep.subr.mxu0 0.0
    %178 = vmatpush1.msra.mxu0 0.0
    %179 = vmatprep.subr.mxu0 0.0
    %180 = vmatpush1.msra.mxu0 0.0
    %181 = vmatprep.subr.mxu0 0.0
    %182 = vmatpush1.msra.mxu0 0.0
    %183 = vmatprep.subr.mxu0 0.0
    %184 = vmatpush1.msra.mxu0 0.0
    %185 = vmatprep.mubr.f32.mxu0 0.0
    %186 = vmatmul.mubr.f32.gmra.mrb[0].mxu0 %v119
    %v187 = vpop.f32.mrb[0].mxu0
    %v188 = vadd.f32 0.0, %v187
    %v189 = vpop.f32.mrb[0].mxu0
    %190 = vdwg.mxu0
    %v191 = vld [vmem:[#allocation7] sm:$0xff]
    %v192 = vld [vmem:[#allocation7 + $0x8] sm:$0xff]
    %v193 = vld [vmem:[#allocation7 + $0x10] sm:$0xff]
    %v194 = vld [vmem:[#allocation7 + $0x18] sm:$0xff]
    %v196 = vsel %vm117, %v112, 0
    %198 = vmatprep.subr.mxu0 0.0
    %199 = vmatpush1.msra.mxu0 %v191
    %200 = vmatprep.subr.mxu0 0.0
    %201 = vmatpush1.msra.mxu0 %v192
    %202 = vmatprep.subr.mxu0 0.0
    %203 = vmatpush1.msra.mxu0 %v193
    %204 = vmatprep.subr.mxu0 0.0
    %205 = vmatpush1.msra.mxu0 %v194
    %206 = vmatprep.subr.mxu0 0.0
    %207 = vmatpush1.msra.mxu0 0.0
    %208 = vmatprep.subr.mxu0 0.0
    %209 = vmatpush1.msra.mxu0 0.0
    %210 = vmatprep.subr.mxu0 0.0
    %211 = vmatpush1.msra.mxu0 0.0
    %212 = vmatprep.subr.mxu0 0.0
    %213 = vmatpush1.msra.mxu0 0.0
    %214 = vmatprep.subr.mxu0 0.0
    %215 = vmatpush1.msra.mxu0 0.0
    %216 = vmatprep.subr.mxu0 0.0
    %217 = vmatpush1.msra.mxu0 0.0
    %218 = vmatprep.subr.mxu0 0.0
    %219 = vmatpush1.msra.mxu0 0.0
    %220 = vmatprep.subr.mxu0 0.0
    %221 = vmatpush1.msra.mxu0 0.0
    %222 = vmatprep.subr.mxu0 0.0
    %223 = vmatpush1.msra.mxu0 0.0
    %224 = vmatprep.subr.mxu0 0.0
    %225 = vmatpush1.msra.mxu0 0.0
    %226 = vmatprep.subr.mxu0 0.0
    %227 = vmatpush1.msra.mxu0 0.0
    %228 = vmatprep.subr.mxu0 0.0
    %229 = vmatpush1.msra.mxu0 0.0
    %230 = vmatprep.subr.mxu0 0.0
    %231 = vmatpush1.msra.mxu0 0.0
    %232 = vmatprep.subr.mxu0 0.0
    %233 = vmatpush1.msra.mxu0 0.0
    %234 = vmatprep.subr.mxu0 0.0
    %235 = vmatpush1.msra.mxu0 0.0
    %236 = vmatprep.subr.mxu0 0.0
    %237 = vmatpush1.msra.mxu0 0.0
    %238 = vmatprep.subr.mxu0 0.0
    %239 = vmatpush1.msra.mxu0 0.0
    %240 = vmatprep.subr.mxu0 0.0
    %241 = vmatpush1.msra.mxu0 0.0
    %242 = vmatprep.subr.mxu0 0.0
    %243 = vmatpush1.msra.mxu0 0.0
    %244 = vmatprep.subr.mxu0 0.0
    %245 = vmatpush1.msra.mxu0 0.0
    %246 = vmatprep.subr.mxu0 0.0
    %247 = vmatpush1.msra.mxu0 0.0
    %248 = vmatprep.subr.mxu0 0.0
    %249 = vmatpush1.msra.mxu0 0.0
    %250 = vmatprep.subr.mxu0 0.0
    %251 = vmatpush1.msra.mxu0 0.0
    %252 = vmatprep.subr.mxu0 0.0
    %253 = vmatpush1.msra.mxu0 0.0
    %254 = vmatprep.subr.mxu0 0.0
    %255 = vmatpush1.msra.mxu0 0.0
    %256 = vmatprep.subr.mxu0 0.0
    %257 = vmatpush1.msra.mxu0 0.0
    %258 = vmatprep.subr.mxu0 0.0
    %259 = vmatpush1.msra.mxu0 0.0
    %260 = vmatprep.subr.mxu0 0.0
    %261 = vmatpush1.msra.mxu0 0.0
    %262 = vmatprep.mubr.f32.mxu0 0.0
    %263 = vmatmul.mubr.f32.gmra.mrb[0].mxu0 %v196
    %v264 = vpop.f32.mrb[0].mxu0
    %v265 = vadd.f32 0.0, %v264
    %v266 = vpop.f32.mrb[0].mxu0
    %267 = vdwg.mxu0
    %v269 = vsel %vm117, %v188, 0
    %v272 = vsel %vm117, %v265, 0
    %274 = vmatprep.subr.mxu0 0.0
    %275 = vmatpush1.xpose.msra.mxu0 %v272
    %276 = vmatprep.subr.mxu0 0.0
    %277 = vmatpush1.xpose.msra.mxu0 0.0
    %278 = vmatprep.subr.mxu0 0.0
    %279 = vmatpush1.xpose.msra.mxu0 0.0
    %280 = vmatprep.subr.mxu0 0.0
    %281 = vmatpush1.xpose.msra.mxu0 0.0
    %282 = vmatprep.subr.mxu0 0.0
    %283 = vmatpush1.xpose.msra.mxu0 0.0
    %284 = vmatprep.subr.mxu0 0.0
    %285 = vmatpush1.xpose.msra.mxu0 0.0
    %286 = vmatprep.subr.mxu0 0.0
    %287 = vmatpush1.xpose.msra.mxu0 0.0
    %288 = vmatprep.subr.mxu0 0.0
    %289 = vmatpush1.xpose.msra.mxu0 0.0
    %290 = vmatprep.subr.mxu0 0.0
    %291 = vmatpush1.xpose.msra.mxu0 0.0
    %292 = vmatprep.subr.mxu0 0.0
    %293 = vmatpush1.xpose.msra.mxu0 0.0
    %294 = vmatprep.subr.mxu0 0.0
    %295 = vmatpush1.xpose.msra.mxu0 0.0
    %296 = vmatprep.subr.mxu0 0.0
    %297 = vmatpush1.xpose.msra.mxu0 0.0
    %298 = vmatprep.subr.mxu0 0.0
    %299 = vmatpush1.xpose.msra.mxu0 0.0
    %300 = vmatprep.subr.mxu0 0.0
    %301 = vmatpush1.xpose.msra.mxu0 0.0
    %302 = vmatprep.subr.mxu0 0.0
    %303 = vmatpush1.xpose.msra.mxu0 0.0
    %304 = vmatprep.subr.mxu0 0.0
    %305 = vmatpush1.xpose.msra.mxu0 0.0
    %306 = vmatprep.subr.mxu0 0.0
    %307 = vmatpush1.xpose.msra.mxu0 0.0
    %308 = vmatprep.subr.mxu0 0.0
    %309 = vmatpush1.xpose.msra.mxu0 0.0
    %310 = vmatprep.subr.mxu0 0.0
    %311 = vmatpush1.xpose.msra.mxu0 0.0
    %312 = vmatprep.subr.mxu0 0.0
    %313 = vmatpush1.xpose.msra.mxu0 0.0
    %314 = vmatprep.subr.mxu0 0.0
    %315 = vmatpush1.xpose.msra.mxu0 0.0
    %316 = vmatprep.subr.mxu0 0.0
    %317 = vmatpush1.xpose.msra.mxu0 0.0
    %318 = vmatprep.subr.mxu0 0.0
    %319 = vmatpush1.xpose.msra.mxu0 0.0
    %320 = vmatprep.subr.mxu0 0.0
    %321 = vmatpush1.xpose.msra.mxu0 0.0
    %322 = vmatprep.subr.mxu0 0.0
    %323 = vmatpush1.xpose.msra.mxu0 0.0
    %324 = vmatprep.subr.mxu0 0.0
    %325 = vmatpush1.xpose.msra.mxu0 0.0
    %326 = vmatprep.subr.mxu0 0.0
    %327 = vmatpush1.xpose.msra.mxu0 0.0
    %328 = vmatprep.subr.mxu0 0.0
    %329 = vmatpush1.xpose.msra.mxu0 0.0
    %330 = vmatprep.subr.mxu0 0.0
    %331 = vmatpush1.xpose.msra.mxu0 0.0
    %332 = vmatprep.subr.mxu0 0.0
    %333 = vmatpush1.xpose.msra.mxu0 0.0
    %334 = vmatprep.subr.mxu0 0.0
    %335 = vmatpush1.xpose.msra.mxu0 0.0
    %336 = vmatprep.subr.mxu0 0.0
    %337 = vmatpush1.xpose.msra.mxu0 0.0
    %338 = vmatprep.mubr.f32.mxu0 0.0
    %339 = vmatmul.mubr.f32.gmra.mrb[0].mxu0 %v269
    %v340 = vpop.f32.mrb[0].mxu0
    %v341 = vadd.f32 0.0, %v340
    %v342 = vpop.f32.mrb[0].mxu0
    %343 = vdwg.mxu0
    %v344 = vmul.f32 %v341, 0.17677669
    %vm345 = vcmask 27648
    %v346 = vsel %vm345, %v344, -inf
    %v347 = vrot.slane %v346, 4
    %v348 = vmax.f32 %v346, %v347
    %v349 = vrot.slane %v348, 2
    %v350 = vmax.f32 %v348, %v349
    %v351 = vrot.slane %v350, 1
    %v352 = vmax.f32 %v350, %v351
    %v353 = vsub.f32 %v344, %v352
    %v354 = vmul.f32 %v353, 1.442695
    %v355 = vpow.pop %v354
    %v356 = vsel %vm345, %v355, 0.0
    %v357 = vrot.slane %v356, 4
    %v358 = vadd.f32 %v356, %v357
    %v359 = vrot.slane %v358, 2
    %v360 = vadd.f32 %v358, %v359
    %v361 = vrot.slane %v360, 1
    %v362 = vadd.f32 %v360, %v361
    %v363 = vrcp.pop %v362
    %v364 = vmul.f32 %v355, %v363
    %v365 = vlaneseq
    %v366 = vshrl.u32 %v365, 7
    %vm367 = vcmp.ge.s32.totalorder %v366, 0
    %vm368 = vcmp.ge.s32.totalorder %v366, 1
    %vm369 = vcmp.ge.s32.totalorder %v366, 2
    %vm370 = vcmp.ge.s32.totalorder %v366, 3
    %v372 = vunpack.c.l.s4 1966171168
    %v373 = vunpack.c.0.s8 %v372
    %v374 = vlaneseq
    %v375 = vshrl.u32 %v374, 7
    %v376 = vsub.s32 %v373, %v375
    %v377 = vrot.slane %v111, %v376
    %v378 = vcombine.high %v377, %v377
    %v380 = vunpack.c.l.s4 1966171168
    %v381 = vunpack.c.0.s8 %v380
    %v382 = vlaneseq
    %v383 = vshrl.u32 %v382, 7
    %v384 = vsub.s32 %v381, %v383
    %v385 = vrot.slane %v377, %v384
    %v387 = vunpack.c.l.s4 1966171168
    %v388 = vunpack.c.0.s8 %v387
    %v389 = vlaneseq
    %v390 = vshrl.u32 %v389, 7
    %v391 = vsub.s32 %v388, %v390
    %v392 = vrot.slane %v378, %v391
    %v393 = vcombine.high %v385, %v385
    %v394 = vcombine.high %v392, %v392
    %v395 = vsel %vm367, 1, 0
    %v396 = vsel %vm368, 1, 0
    %v397 = vsel %vm369, 1, 0
    %v398 = vsel %vm370, 1, 0
    %vm399 = vcmp.eq.s32.totalorder %v395, 1
    %vm400 = vcmp.eq.s32.totalorder %v396, 1
    %vm401 = vcmp.eq.s32.totalorder %v397, 1
    %vm402 = vcmp.eq.s32.totalorder %v398, 1
    %v403 = vlaneseq
    %v404 = vshrl.u32 %v403, 7
    %v405 = vsub.s32 0, %v404
    %v406 = vrot.slane %v385, %v405
    %v407 = vlaneseq
    %v408 = vshrl.u32 %v407, 7
    %v409 = vsub.s32 0, %v408
    %v410 = vrot.slane %v392, %v409
    %v411 = vlaneseq
    %v412 = vshrl.u32 %v411, 7
    %v413 = vsub.s32 0, %v412
    %v414 = vrot.slane %v393, %v413
    %v415 = vlaneseq
    %v416 = vshrl.u32 %v415, 7
    %v417 = vsub.s32 0, %v416
    %v418 = vrot.slane %v394, %v417
    %v423 = vsel %vm399, %v406, %v111
    %v424 = vsel %vm400, %v410, %v111
    %v425 = vsel %vm401, %v414, %v111
    %v426 = vsel %vm402, %v418, %v111
    %v428 = vunpack.c.l.s4 1966171168
    %v429 = vunpack.c.0.s8 %v428
    %v430 = vlaneseq
    %v431 = vshrl.u32 %v430, 7
    %v432 = vsub.s32 %v429, %v431
    %v433 = vrot.slane %v112, %v432
    %v434 = vcombine.high %v433, %v433
    %v436 = vunpack.c.l.s4 1966171168
    %v437 = vunpack.c.0.s8 %v436
    %v438 = vlaneseq
    %v439 = vshrl.u32 %v438, 7
    %v440 = vsub.s32 %v437, %v439
    %v441 = vrot.slane %v433, %v440
    %v443 = vunpack.c.l.s4 1966171168
    %v444 = vunpack.c.0.s8 %v443
    %v445 = vlaneseq
    %v446 = vshrl.u32 %v445, 7
    %v447 = vsub.s32 %v444, %v446
    %v448 = vrot.slane %v434, %v447
    %v449 = vcombine.high %v441, %v441
    %v450 = vcombine.high %v448, %v448
    %v451 = vlaneseq
    %v452 = vshrl.u32 %v451, 7
    %v453 = vsub.s32 0, %v452
    %v454 = vrot.slane %v441, %v453
    %v455 = vlaneseq
    %v456 = vshrl.u32 %v455, 7
    %v457 = vsub.s32 0, %v456
    %v458 = vrot.slane %v448, %v457
    %v459 = vlaneseq
    %v460 = vshrl.u32 %v459, 7
    %v461 = vsub.s32 0, %v460
    %v462 = vrot.slane %v449, %v461
    %v463 = vlaneseq
    %v464 = vshrl.u32 %v463, 7
    %v465 = vsub.s32 0, %v464
    %v466 = vrot.slane %v450, %v465
    %v471 = vsel %vm399, %v112, %v454
    %v472 = vsel %vm400, %v112, %v458
    %v473 = vsel %vm401, %v112, %v462
    %v474 = vsel %vm402, %v112, %v466
    %v475 = vsub.f32 %v423, %v471
    %v476 = vsub.f32 %v424, %v472
    %v477 = vsub.f32 %v425, %v473
    %v478 = vsub.f32 %v426, %v474
    %v479 = vadd.f32 %v475, 1e-06
    %v480 = vadd.f32 %v476, 1e-06
    %v481 = vadd.f32 %v477, 1e-06
    %v482 = vadd.f32 %v478, 1e-06
    %v483 = vmul.f32 %v479, %v479
    %v484 = vmul.f32 %v480, %v480
    %v485 = vmul.f32 %v481, %v481
    %v486 = vmul.f32 %v482, %v482
    %vm487 = vcmask 257024
    %v488 = vsel %vm487, %v483, 0.0
    %489 = vadd.xlane.f32.xlu0 %v488
    %v490 = vpop.xlane.xlu0 %489
    %v491 = vsel %vm487, %v484, 0.0
    %492 = vadd.xlane.f32.xlu0 %v491
    %v493 = vpop.xlane.xlu0 %492
    %v494 = vsel %vm487, %v485, 0.0
    %495 = vadd.xlane.f32.xlu0 %v494
    %v496 = vpop.xlane.xlu0 %495
    %v497 = vsel %vm487, %v486, 0.0
    %498 = vadd.xlane.f32.xlu0 %v497
    %v499 = vpop.xlane.xlu0 %498
    %v500 = vrsqrt.pop %v490
    %v501 = vmul.f32 %v490, %v500
    %vm502 = vcmp.eq.f32.partialorder %v490, inf
    %v503 = vsel %vm502, %v490, %v501
    %vm504 = vcmp.eq.f32.partialorder %v490, 0.0
    %v505 = vand.u32 %v490, 2147483648
    %v506 = vsel %vm504, %v505, %v503
    %v507 = vrsqrt.pop %v493
    %v508 = vmul.f32 %v493, %v507
    %vm509 = vcmp.eq.f32.partialorder %v493, inf
    %v510 = vsel %vm509, %v493, %v508
    %vm511 = vcmp.eq.f32.partialorder %v493, 0.0
    %v512 = vand.u32 %v493, 2147483648
    %v513 = vsel %vm511, %v512, %v510
    %v514 = vrsqrt.pop %v496
    %v515 = vmul.f32 %v496, %v514
    %vm516 = vcmp.eq.f32.partialorder %v496, inf
    %v517 = vsel %vm516, %v496, %v515
    %vm518 = vcmp.eq.f32.partialorder %v496, 0.0
    %v519 = vand.u32 %v496, 2147483648
    %v520 = vsel %vm518, %v519, %v517
    %v521 = vrsqrt.pop %v499
    %v522 = vmul.f32 %v499, %v521
    %vm523 = vcmp.eq.f32.partialorder %v499, inf
    %v524 = vsel %vm523, %v499, %v522
    %vm525 = vcmp.eq.f32.partialorder %v499, 0.0
    %v526 = vand.u32 %v499, 2147483648
    %v527 = vsel %vm525, %v526, %v524
    %v532 = vlaneseq
    %v533 = vand.u32 %v532, 127
    %v534 = vlaneseq
    %v535 = vshrl.u32 %v534, 7
    %v536 = vsub.s32 %v533, %v535
    %v537 = vrot.slane %v506, %v536
    %v538 = vlaneseq
    %v539 = vshrl.u32 %v538, 7
    %v540 = vsub.s32 %v533, %v539
    %v541 = vrot.slane %v513, %v540
    %v542 = vlaneseq
    %v543 = vshrl.u32 %v542, 7
    %v544 = vsub.s32 %v533, %v543
    %v545 = vrot.slane %v520, %v544
    %v546 = vlaneseq
    %v547 = vshrl.u32 %v546, 7
    %v548 = vsub.s32 %v533, %v547
    %v549 = vrot.slane %v527, %v548
    %vm550 = vcmask 1041409
    %v551 = vsel %vm550, %v541, %v537
    %vm552 = vcmask 1042434
    %v553 = vsel %vm552, %v545, %v551
    %vm554 = vcmask 1043459
    %v555 = vsel %vm554, %v549, %v553
    %v557 = vmul.f32 %v364, %v555
    %v558 = vsel %vm345, %v557, 0.0
    %559 = vadd.xlane.f32.xlu0 %v558
    %v560 = vpop.xlane.xlu0 %559
    %v561 = vrot.slane %v560, 4
    %v562 = vadd.f32 %v560, %v561
    %v563 = vrot.slane %v562, 2
    %v564 = vadd.f32 %v562, %v563
    %v565 = vrot.slane %v564, 1
    %v566 = vadd.f32 %v564, %v565
    %s567 = vtos %v566
    %s568 = smul.f32 %s567, 0.001
    %s569 = sadd.f32 %s110, %s568
    %s570 = scalar_lea.smem [#allocation8], 0
    %571 = sst [smem:[%s570]] %s569
    // Predicated region
    $region38: #{tpu_custom_call.1} parent=1 // pred_check
      _
    $region39: #{tpu_custom_call.1} parent=1 // pred_check_branch
      %573 = sbr.rel (0) target = $region41
    $region40: #{tpu_custom_call.1} parent=1 // pred_region
      %s575 = ssub.s32 16, 16
      %576 = vsyncadd [#allocation4], %s575
      %579 = dma.smem_to_hbm [#allocation8], 16, %s6, [#allocation4]
    $region41: #{tpu_custom_call.1} parent=1 // pred_fallthru
      _
    // Predicated region
    $region42: #{tpu_custom_call.1} parent=1 // pred_check
      _
    $region43: #{tpu_custom_call.1} parent=1 // pred_check_branch
      %581 = sbr.rel (0) target = $region45
    $region44: #{tpu_custom_call.1} parent=1 // pred_region
      %582 = dma.done [#allocation4], 16
    $region45: #{tpu_custom_call.1} parent=1 // pred_fallthru
      _
    %583 = sfence
    %584 = vsyncpa [#allocation3], 1
    %585 = vsyncpa [#allocation6], 1
    %586 = vsyncpa [#allocation4], 1

</llo_original>
